<compile_context>
chip_gen: v7x
topology: tpu7x:2x2x1
jax: 0.10.0
libtpu: 0.0.40
codegen_flags: <defaults>
</compile_context>

<pallas_src>
import jax
import jax.numpy as jnp
from jax.experimental import pallas as pl
from jax.experimental.pallas import tpu as pltpu

_LANE = 128      # lane granularity for the last block dim
_SUBLANE = 8     # sublane granularity for the second-to-last block dim


def _membrane_kernel_direct(x_ref, o_ref):
    # x_ref: (C, TILE_S) -- full channel extent in one block; o_ref: (1, TILE_S)
    o_ref[...] = jnp.sum(
        x_ref[...].astype(jnp.float32), axis=0, keepdims=True
    ).astype(o_ref.dtype)


def _membrane_kernel_accum(x_ref, o_ref, acc_ref):
    # x_ref: (C_TILE, TILE_S); o_ref: (1, TILE_S); acc_ref: (1, TILE_S) f32 scratch.
    # The channel-chunk axis is the last (innermost, "arbitrary") grid axis, so the
    # output block and the scratch accumulator stay resident across it.
    c = pl.program_id(2)

    @pl.when(c == 0)
    def _():
        acc_ref[...] = jnp.zeros_like(acc_ref)

    acc_ref[...] += jnp.sum(x_ref[...].astype(jnp.float32), axis=0, keepdims=True)

    @pl.when(c == pl.num_programs(2) - 1)
    def _():
        o_ref[...] = acc_ref[...].astype(o_ref.dtype)


def _largest_divisor_tile(extent, unit, cap):
    """Largest multiple of `unit` that divides `extent` and is <= cap.

    Falls back to the full extent (always a legal block shape) if the extent
    already fits under the cap or no such divisor exists."""
    if extent <= cap:
        return extent
    t = (cap // unit) * unit
    while t >= unit:
        if extent % t == 0:
            return t
        t -= unit
    return extent


def membrane_forward(x, *, max_spatial_tile=2048, vmem_budget_bytes=8 * 1024 * 1024):
    """Equivalent of torch.sum(x, dim=1) for x of shape (B, C, *spatial)."""
    assert x.ndim >= 2, "expected at least (B, C, ...)"
    B, C = int(x.shape[0]), int(x.shape[1])
    spatial = tuple(int(d) for d in x.shape[2:])
    S = 1
    for d in spatial:
        S *= d
    itemsize = x.dtype.itemsize

    x_flat = x.reshape(B, C, S)

    # Lane-dense spatial tile: a multiple of 128 (or the full extent) large enough
    # to amortize the ~0.35us per-grid-step overhead.
    tile_s = _largest_divisor_tile(S, _LANE, max_spatial_tile)

    # Channel tile: keep the double-buffered input block (2 * C_TILE * TILE_S *
    # itemsize) under the VMEM budget; any remaining channels become the trailing
    # reduction grid axis, decoupling VMEM footprint from C.
    c_cap = max(_SUBLANE, vmem_budget_bytes // (2 * tile_s * itemsize))
    tile_c = _largest_divisor_tile(C, _SUBLANE, c_cap)

    grid = (B, S // tile_s, C // tile_c)
    num_c_tiles = grid[2]

    # Output kept as (B, 1, S): last two block dims are (1=full, TILE_S=lane multiple),
    # so stores are unmasked, full-lane vst's; reshaped back to (B, *spatial) below.
    out_shape = jax.ShapeDtypeStruct((B, 1, S), x.dtype)

    in_spec = pl.BlockSpec(
        (pl.Squeezed(), tile_c, tile_s),   # kernel sees (C_TILE, TILE_S)
        lambda b, s, c: (b, c, s),
    )
    out_spec = pl.BlockSpec(
        (pl.Squeezed(), 1, tile_s),        # kernel sees (1, TILE_S)
        lambda b, s, c: (b, 0, s),
    )

    if num_c_tiles == 1:
        kernel = _membrane_kernel_direct
        scratch_shapes = []
    else:
        kernel = _membrane_kernel_accum
        scratch_shapes = [pltpu.VMEM((1, tile_s), jnp.float32)]

    # ~(C-1) adds per (C+1)*itemsize bytes moved: memory-bound on every generation.
    cost = pl.CostEstimate(
        flops=B * max(C - 1, 0) * S,
        transcendentals=0,
        bytes_accessed=(B * C * S + B * S) * itemsize,
    )

    out_flat = pl.pallas_call(
        kernel,
        out_shape=out_shape,
        grid_spec=pltpu.PrefetchScalarGridSpec(
            num_scalar_prefetch=0,
            grid=grid,
            in_specs=[in_spec],
            out_specs=out_spec,
            scratch_shapes=scratch_shapes,
        ),
        compiler_params=pltpu.CompilerParams(
            dimension_semantics=("parallel", "parallel", "arbitrary"),
        ),
        cost_estimate=cost,
    )(x_flat)

    return out_flat.reshape((B,) + spatial)


if __name__ == "__main__":
    # Primary example: matches the PyTorch module's typical NCHW usage.
    key = jax.random.PRNGKey(0)
    B, C, H, W = 2, 4, 16, 16
    x = jax.random.normal(key, (B, C, H, W), dtype=jnp.float32)

    out = jax.block_until_ready(membrane_forward(x))
    ref = jnp.sum(x, axis=1)
    assert out.shape == ref.shape, (out.shape, ref.shape)
    assert jnp.allclose(out, ref, atol=1e-5, rtol=1e-5), "mismatch vs reference"

    # Secondary check: exercises the spatial-tiling + channel-chunk reduction path.
    x2 = jax.random.normal(jax.random.PRNGKey(0), (2, 1024, 32, 80), dtype=jnp.float32)
    out2 = jax.block_until_ready(membrane_forward(x2))
    ref2 = jnp.sum(x2, axis=1)
    assert out2.shape == ref2.shape, (out2.shape, ref2.shape)
    assert jnp.allclose(out2, ref2, atol=1e-2, rtol=1e-4), "mismatch vs reference (tiled)"

    print("KERNEL_OK")
</pallas_src>

<mosaic_0001>
module attributes {stable_mosaic.version = 11 : i64} {
  func.func @_membrane_kernel_direct(%arg0: i32, %arg1: i32, %arg2: i32, %arg3: memref<1x4x256xf32, #tpu.memory_space<vmem>>, %arg4: memref<1x1x256xf32, #tpu.memory_space<vmem>>) attributes {dimension_semantics = [#tpu.dimension_semantics<parallel>, #tpu.dimension_semantics<parallel>, #tpu.dimension_semantics<arbitrary>], iteration_bounds = array<i64: 2, 1, 1>, scalar_prefetch = 0 : i64, scratch_operands = 0 : i64, tpu.core_type = #tpu.core_type<tc>, window_params = [{transform_indices = @transform_0, window_bounds = array<i64: 1, 4, 256>}, {transform_indices = @transform_1, window_bounds = array<i64: 1, 1, 256>}]} {
    %c0 = arith.constant 0 : index
    %c0_0 = arith.constant 0 : index
    %c0_1 = arith.constant 0 : index
    %0 = vector.load %arg3[%c0, %c0_0, %c0_1] : memref<1x4x256xf32, #tpu.memory_space<vmem>>, vector<1x4x256xf32>
    %1 = vector.shape_cast %0 : vector<1x4x256xf32> to vector<4x256xf32>
    %cst = arith.constant dense<0.000000e+00> : vector<256xf32>
    %2 = vector.multi_reduction <add>, %1, %cst [0] : vector<4x256xf32> to vector<256xf32>
    %3 = vector.shape_cast %2 : vector<256xf32> to vector<1x256xf32>
    %c0_2 = arith.constant 0 : index
    %c0_3 = arith.constant 0 : index
    %c0_4 = arith.constant 0 : index
    %4 = vector.load %arg4[%c0_2, %c0_3, %c0_4] : memref<1x1x256xf32, #tpu.memory_space<vmem>>, vector<1x1x256xf32>
    %5 = vector.shape_cast %4 : vector<1x1x256xf32> to vector<1x256xf32>
    %6 = vector.shape_cast %3 : vector<1x256xf32> to vector<1x1x256xf32>
    tpu.vector_store %arg4[%c0_2, %c0_3, %c0_4], %6 {strides = array<i32>} : memref<1x1x256xf32, #tpu.memory_space<vmem>>, vector<1x1x256xf32>,
    return
  }
  func.func @transform_0(%arg0: i32, %arg1: i32, %arg2: i32) -> (i32, i32, i32) {
    %c0_i32 = arith.constant 0 : i32
    return %arg0, %arg2, %arg1 : i32, i32, i32
  }
  func.func @transform_1(%arg0: i32, %arg1: i32, %arg2: i32) -> (i32, i32, i32) {
    %c0_i32 = arith.constant 0 : i32
    %c0_i32_0 = arith.constant 0 : i32
    return %arg0, %c0_i32, %arg1 : i32, i32, i32
  }
}

</mosaic_0001>

<llo_original>
// kernel: tpu_custom_call.1
$region0: #{tpu_custom_call.1}
  #allocation0 [shape = 'u32[]', space=smem, size = 0x4, offset = 0x4, fixed_abs, tag = 'smem constant byte address 0x4 - core index']
  #allocation1 [shape = 'u32[144,128]{1,0:T(1,128)}', space=vmem, size = 0x12000, scoped, tag = 'internal scratch']
  %s0 = inlined_call_operand.hbm [shape: f32[2,4,256], index: 0, kind: input, shape index: {}]
  %s1 = inlined_call_operand.hbm [shape: f32[2,1,256], index: 1, kind: output, shape index: {}]
  %s2 = sld [smem:[#allocation0]]
  $region41: #{tpu_custom_call.1} parent=0
    _
  %s4 = ssub.s32 1, %s2
  %s5 = scalar_select 0, %s4, %s2
  $region1: #{tpu_custom_call.1} parent=0
    #allocation2 [shape = 'u8[8192]{0}', space=vmem, size = 0x2000, scoped, tag = 'input window, operand 0']
    #allocation3 [shape = 's32[2]{0}', space=sflag, size = 0x8, scoped, tag = 'scoped memory for tpu_custom_call.1']
    #allocation4 [shape = 's32[2]{0}', space=sflag, size = 0x8, scoped, tag = 'scoped memory for tpu_custom_call.1']
    #allocation5 [shape = 'u8[2048]{0}', space=vmem, size = 0x800, scoped, tag = 'output window, operand 0']
    %6 = vsyncpa [#allocation3], 0
    %s7 = scalar_lea.sflag [#allocation3], 1
    %8 = vsyncpa %s7, 0
    %9 = vsyncpa [#allocation4], 0
    %s10 = scalar_lea.sflag [#allocation4], 1
    %11 = vsyncpa %s10, 0
    loop: start=0, step=1, limit=4
    $region2: #{tpu_custom_call.1} parent=1 // loop_pre_header
      _
    $region3: #{tpu_custom_call.1} parent=1 // loop_header
      %s13 = sphi 0, %s17
      %p14 = scmp.ge.s32.totalorder %s13, 4
      %s20 = sphi 0, %s39
      %s21 = sphi 0, %s35
      %s22 = sphi 0, %s31
      %s23 = sphi 0, %s20
      %s24 = sphi 0, %s21
      %s25 = sphi 0, %s22
      %s26 = sphi 0, %s23
      %s27 = sphi 0, %s24
      %s28 = sphi 0, %s25
      %s46 = sphi 0, %s48
      %s49 = sphi 0, %s46
      %s50 = sphi 0, %s49
      %s66 = sphi 0, %s50
      %s74 = sphi 0, %s76
      %s77 = sphi 0, %s74
      %s78 = sphi 0, %s77
      %s94 = sphi 0, %s78
    $region4: #{tpu_custom_call.1} parent=1 // loop_header_branch
      %16 = sbr.rel (%p14) target = $region8
    $region5: #{tpu_custom_call.1} parent=1 // loop_body
      %s18 = ssub.s32 %s13, 1
      %s19 = ssub.s32 %s13, 2
      %s29 = sadd.s32 1, %s22
      %p30 = scmp.ge.s32.totalorder %s29, 1
      %s31 = scalar_select %p30, 0, %s29
      %s32 = sadd.s32 1, %s21
      %s33 = scalar_select %p30, %s32, %s21
      %p34 = scmp.ge.s32.totalorder %s33, 1
      %s35 = scalar_select %p34, 0, %s33
      %s36 = sadd.s32 1, %s20
      %s37 = scalar_select %p34, %s36, %s20
      %p38 = scmp.ge.s32.totalorder %s37, 2
      %s39 = scalar_select %p38, 0, %s37
      %s40 = ssub.s32 %s20, %s39
      %s41 = ssub.s32 %s22, %s31
      %s42 = sor.u32 %s40, %s41
      %s43 = ssub.s32 %s21, %s35
      %s44 = sor.u32 %s42, %s43
      %p45 = scmp.eq.s32.totalorder %s44, 0
      %s47 = sadd.s32 %s46, 1
      %s48 = scalar_select %p45, %s46, %s47
      %p51 = pneg %p45
      %p52 = scmp.eq.s32.totalorder %s13, 1
      %p53 = por %p51, %p52
      %p54 = scmp.ne.s32.totalorder %s46, %s49
      %p55 = scmp.eq.s32.totalorder %s13, 0
      %p56 = por %p54, %p55
      %p57 = scmp.ne.s32.totalorder %s46, %s49
      %p58 = scmp.eq.s32.totalorder %s18, 1
      %p59 = por %p57, %p58
      %p60 = scmp.ne.s32.totalorder %s49, %s50
      %p61 = scmp.eq.s32.totalorder %s18, 0
      %p62 = por %p60, %p61
      %p63 = scmp.ne.s32.totalorder %s49, %s50
      %p64 = scmp.eq.s32.totalorder %s19, 1
      %p65 = por %p63, %p64
      %p67 = scmp.ne.s32.totalorder %s50, %s66
      %p68 = scmp.eq.s32.totalorder %s19, 0
      %p69 = por %p67, %p68
      %s70 = ssub.s32 %s20, %s39
      %s71 = ssub.s32 %s21, %s35
      %s72 = sor.u32 %s70, %s71
      %p73 = scmp.eq.s32.totalorder %s72, 0
      %s75 = sadd.s32 %s74, 1
      %s76 = scalar_select %p73, %s74, %s75
      %p79 = pneg %p73
      %p80 = scmp.eq.s32.totalorder %s13, 1
      %p81 = por %p79, %p80
      %p82 = scmp.ne.s32.totalorder %s74, %s77
      %p83 = scmp.eq.s32.totalorder %s13, 0
      %p84 = por %p82, %p83
      %p85 = scmp.ne.s32.totalorder %s74, %s77
      %p86 = scmp.eq.s32.totalorder %s18, 1
      %p87 = por %p85, %p86
      %p88 = scmp.ne.s32.totalorder %s77, %s78
      %p89 = scmp.eq.s32.totalorder %s18, 0
      %p90 = por %p88, %p89
      %p91 = scmp.ne.s32.totalorder %s77, %s78
      %p92 = scmp.eq.s32.totalorder %s19, 1
      %p93 = por %p91, %p92
      %p95 = scmp.ne.s32.totalorder %s78, %s94
      %p96 = scmp.eq.s32.totalorder %s19, 0
      %p97 = por %p95, %p96
      %p98 = scmp.le.s32.totalorder 1, %s13
      %p99 = scmp.lt.s32.totalorder %s13, 3
      %p100 = pnand %p98, %p99
      %p101 = pneg %p100
      // Predicated region
      $region9: #{tpu_custom_call.1} parent=5 // pred_check
        _
      $region10: #{tpu_custom_call.1} parent=5 // pred_check_branch
        %103 = sbr.rel (%p100) target = $region12
      $region11: #{tpu_custom_call.1} parent=5 // pred_region
        %s104 = ssub.s32 %s13, 1
      $region12: #{tpu_custom_call.1} parent=5 // pred_fallthru
        _
      %p105 = scmp.lt.s32.totalorder %s13, 2
      // Predicated region
      $region13: #{tpu_custom_call.1} parent=5 // pred_check
        %p106 = pneg %p105
      $region14: #{tpu_custom_call.1} parent=5 // pred_check_branch
        %108 = sbr.rel (%p106) target = $region16
      $region15: #{tpu_custom_call.1} parent=5 // pred_region
        // Predicated region
        $region17: #{tpu_custom_call.1} parent=15 // pred_check
          %p109 = pneg %p56
        $region18: #{tpu_custom_call.1} parent=15 // pred_check_branch
          %111 = sbr.rel (%p109) target = $region20
        $region19: #{tpu_custom_call.1} parent=15 // pred_region
          %s112 = sand.u32 %s46, 1
          %s113 = scalar_lea.sflag [#allocation3], %s112
          %s114 = sand.u32 %s46, 1
          %s115 = smul.addr %s114, 8
          %s116 = scalar_lea.vmem [#allocation2], %s115
          %s117 = smul.u32 2, %s21
          %s119 = ssub.s32 128, 128
          %120 = vsyncadd %s113, %s119
          %s121 = smul.addr %s22, 2
          %s122 = sadd.s32 %s117, %s121
          %s123 = smul.addr %s20, 2
          %s124 = sadd.s32 %s122, %s123
          %s125 = smul.addr %s124, 64
          %s126 = scalar_lea.hbm %s0, %s125
          %s128 = sshll.u32 %s116, 4
          %s129 = int_to_ptr.vmem [resolvable:$true] %s128
          %131 = dma.hbm_to_vmem [thread:$0]  %s126, 128, %s129, %s113
        $region20: #{tpu_custom_call.1} parent=15 // pred_fallthru
          _
      $region16: #{tpu_custom_call.1} parent=5 // pred_fallthru
        _
      %p132 = scmp.le.s32.totalorder 1, %s13
      %p133 = scmp.lt.s32.totalorder %s13, 3
      %p134 = pnand %p132, %p133
      %p135 = pneg %p134
      // Predicated region
      $region21: #{tpu_custom_call.1} parent=5 // pred_check
        _
      $region22: #{tpu_custom_call.1} parent=5 // pred_check_branch
        %137 = sbr.rel (%p134) target = $region24
      $region23: #{tpu_custom_call.1} parent=5 // pred_region
        %s138 = ssub.s32 %s13, 1
        %s139 = sand.u32 %s49, 1
        %s140 = scalar_lea.sflag [#allocation3], %s139
        %s141 = sand.u32 %s49, 1
        %s142 = smul.addr %s141, 8
        %s143 = scalar_lea.vmem [#allocation2], %s142
        // Predicated region
        $region25: #{tpu_custom_call.1} parent=23 // pred_check
          %p144 = pneg %p62
        $region26: #{tpu_custom_call.1} parent=23 // pred_check_branch
          %146 = sbr.rel (%p144) target = $region28
        $region27: #{tpu_custom_call.1} parent=23 // pred_region
          %147 = dma.done %s140, 128
        $region28: #{tpu_custom_call.1} parent=23 // pred_fallthru
          _
        %s148 = sand.u32 %s49, 1
        %s149 = scalar_lea.sflag [#allocation3], %s148
        %s150 = sand.u32 %s49, 1
        %s151 = smul.addr %s150, 8
        %s152 = scalar_lea.vmem [#allocation2], %s151
        %p153 = pneg %p62
        %p154 = pneg %p59
        %p155 = pneg %p90
        %p156 = pneg %p87
        %s157 = sand.u32 %s77, 1
        %s158 = scalar_lea.sflag [#allocation4], %s157
        %s159 = sand.u32 %s77, 1
        %s160 = smul.addr %s159, 2
        %s161 = scalar_lea.vmem [#allocation5], %s160
        %s162 = smul.u32 2, %s24
        %s163 = smul.u32 2, %s24
        %v164 = vld [vmem:[%s143] sm:$0xff]
        %v166 = vcombine.high %v164, %v164
        %vm168 = vcmask 1043456
        %v169 = vsel %vm168, %v164, 0.0
        %v170 = vrot.slane %v169, 4
        %v171 = vadd.f32 %v169, %v170
        %v172 = vrot.slane %v171, 2
        %v173 = vadd.f32 %v171, %v172
        %v174 = vrot.slane %v173, 1
        %v175 = vadd.f32 %v173, %v174
        %v176 = vsel %vm168, %v166, 0.0
        %v177 = vrot.slane %v176, 4
        %v178 = vadd.f32 %v176, %v177
        %v179 = vrot.slane %v178, 2
        %v180 = vadd.f32 %v178, %v179
        %v181 = vrot.slane %v180, 1
        %v182 = vadd.f32 %v180, %v181
        %v185 = vcombine.low %v175, %v182
        %v187 = vunpack.c.l.s4 1966171168
        %v188 = vunpack.c.0.s8 %v187
        %v189 = vlaneseq
        %v190 = vshrl.u32 %v189, 7
        %v191 = vsub.s32 %v188, %v190
        %v192 = vrot.slane %v185, %v191
        %v194 = vunpack.c.l.s4 1966171168
        %v195 = vunpack.c.0.s8 %v194
        %v196 = vlaneseq
        %v197 = vshrl.u32 %v196, 7
        %v198 = vsub.s32 %v195, %v197
        %v199 = vrot.slane %v192, %v198
        %v201 = vlaneseq
        %vm202 = vcmp.ge.s32.totalorder %v201, 0
        %vm203 = vcmp.lt.s32.totalorder %v201, 256
        %vm204 = vmand %vm202, %vm203
        %205 = vst.msk [vmem:[%s161] sm:$0x3] %vm204, %v199
        %s206 = sand.u32 %s77, 1
        %s207 = scalar_lea.sflag [#allocation4], %s206
        %s208 = sand.u32 %s77, 1
        %s209 = smul.addr %s208, 2
        %s210 = scalar_lea.vmem [#allocation5], %s209
        // Predicated region
        $region29: #{tpu_custom_call.1} parent=23 // pred_check
          %p211 = pneg %p87
        $region30: #{tpu_custom_call.1} parent=23 // pred_check_branch
          %213 = sbr.rel (%p211) target = $region32
        $region31: #{tpu_custom_call.1} parent=23 // pred_region
          %s214 = smul.u32 2, %s24
          %s216 = ssub.s32 32, 32
          %217 = vsyncadd %s207, %s216
          %s218 = smul.addr %s23, 2
          %s219 = sadd.s32 %s214, %s218
          %s220 = smul.addr %s219, 16
          %s221 = scalar_lea.hbm %s1, %s220
          %s223 = sshll.u32 %s210, 4
          %s224 = int_to_ptr.vmem [resolvable:$true] %s223
          %226 = dma.vmem_to_hbm [thread:$0]  %s224, 32, %s221, %s207
        $region32: #{tpu_custom_call.1} parent=23 // pred_fallthru
          _
      $region24: #{tpu_custom_call.1} parent=5 // pred_fallthru
        _
      %p227 = scmp.le.s32.totalorder 2, %s13
      // Predicated region
      $region33: #{tpu_custom_call.1} parent=5 // pred_check
        %p228 = pneg %p227
      $region34: #{tpu_custom_call.1} parent=5 // pred_check_branch
        %230 = sbr.rel (%p228) target = $region36
      $region35: #{tpu_custom_call.1} parent=5 // pred_region
        %s231 = ssub.s32 %s13, 2
        // Predicated region
        $region37: #{tpu_custom_call.1} parent=35 // pred_check
          %p232 = pneg %p93
        $region38: #{tpu_custom_call.1} parent=35 // pred_check_branch
          %234 = sbr.rel (%p232) target = $region40
        $region39: #{tpu_custom_call.1} parent=35 // pred_region
          %s235 = sand.u32 %s78, 1
          %s236 = scalar_lea.sflag [#allocation4], %s235
          %s237 = sand.u32 %s78, 1
          %s238 = smul.addr %s237, 2
          %s239 = scalar_lea.vmem [#allocation5], %s238
          %240 = dma.done %s236, 32
        $region40: #{tpu_custom_call.1} parent=35 // pred_fallthru
          _
      $region36: #{tpu_custom_call.1} parent=5 // pred_fallthru
        _
    $region6: #{tpu_custom_call.1} parent=1 // loop_footer
      %s17 = sadd.s32 1, %s13
    $region7: #{tpu_custom_call.1} parent=1 // loop_footer_branch
      %12 = sbr.rel target = $region3
    $region8: #{tpu_custom_call.1} parent=1 // loop_exit
      _
    %241 = vsyncpa [#allocation3], 1
    %s242 = scalar_lea.sflag [#allocation3], 1
    %243 = vsyncpa %s242, 1
    %244 = vsyncpa [#allocation4], 1
    %s245 = scalar_lea.sflag [#allocation4], 1
    %246 = vsyncpa %s245, 1

</llo_original>
